<compile_context>
chip_gen: v7x
topology: tpu7x:2x2x1
jax: 0.10.0
libtpu: 0.0.40
codegen_flags: <defaults>
</compile_context>

<pallas_src>
import functools
import random

import numpy as np
import jax
import jax.numpy as jnp
from jax import lax
from jax.experimental import pallas as pl
from jax.experimental.pallas import tpu as pltpu

P_APPLY = 0.2          # probability of applying fn (BYOL GaussianBlur default)
SIGMA = 1.0

_TARGET_BLOCK_BYTES = 4 << 20   # ~4 MiB input block: near-peak HBM roofline
_VMEM_LIMIT_BYTES = 48 << 20    # 2x(in+out) blocks + f32 temps, < v7x 64 MiB


def _gaussian_taps(sigma):
    d = np.array([-1.0, 0.0, 1.0])
    g = np.exp(-(d ** 2) / (2.0 * sigma ** 2))
    g = g / g.sum()
    return float(g[0]), float(g[1])          # (edge tap, center tap); symmetric


_G0, _G1 = _gaussian_taps(SIGMA)
_W2D = np.outer([_G0, _G1, _G0], [_G0, _G1, _G0]).astype(np.float32)  # reference


def _blur_kernel(x_ref, o_ref, *, h, w, g0, g1):
    """Separable 3x3 Gaussian blur on a (cblk, h*w) block of flattened planes."""
    x = x_ref[...].astype(jnp.float32)
    hw = h * w

    # Boundary masks, hoisted: built once per block, broadcast over planes.
    i = lax.broadcasted_iota(jnp.int32, (1, hw), 1)
    up_ok = i >= w                       # row above exists
    down_ok = i < hw - w                 # row below exists
    col = i % w
    left_ok = col != 0                   # column to the left exists
    right_ok = col != w - 1              # column to the right exists

    # Vertical pass: y[i] = g1*x[i] + g0*(x[i-w] + x[i+w]), zero padding.
    up = pltpu.roll(x, shift=w, axis=1)            # up[i]   == x[i - w]
    down = pltpu.roll(x, shift=hw - w, axis=1)     # down[i] == x[i + w]
    y = g1 * x + g0 * (jnp.where(up_ok, up, 0.0) + jnp.where(down_ok, down, 0.0))

    # Horizontal pass: z[i] = g1*y[i] + g0*(y[i-1] + y[i+1]), zero padding.
    left = pltpu.roll(y, shift=1, axis=1)          # left[i]  == y[i - 1]
    right = pltpu.roll(y, shift=hw - 1, axis=1)    # right[i] == y[i + 1]
    z = g1 * y + g0 * (jnp.where(left_ok, left, 0.0) + jnp.where(right_ok, right, 0.0))

    o_ref[...] = z.astype(o_ref.dtype)


def _pick_cblk(planes, hw, itemsize):
    """Planes per block.

    Dtype-aware sublane alignment (8 for f32, 16 for bf16, 32 for int8/fp8),
    ~<= 4 MiB of input per block, never larger than the sublane-padded planes
    axis, and — when planes allow more than one step — a preference for an
    even step count so v7x's two TensorCores split the grid evenly.
    No exact-divisor requirement: the caller pads planes up to a multiple.
    """
    sub = max(8, 32 // max(itemsize, 1))               # dtype sublane tile
    plane_bytes = max(1, hw * itemsize)
    cap = max(sub, (int(_TARGET_BLOCK_BYTES // plane_bytes) // sub) * sub)
    cblk = min(cap, (-(-planes // sub)) * sub)          # <= padded planes
    if planes > cblk:                                   # already >= 2 steps
        c = cblk
        while c >= max(sub, cblk // 2):                 # prefer even step count
            if (-(-planes // c)) % 2 == 0:
                cblk = c
                break
            c -= sub
    return cblk


def gaussian_blur_3x3(x):
    """3x3 depthwise Gaussian blur (sigma=SIGMA, zero 'same' padding), NCHW."""
    n, c, h, w = x.shape
    planes, hw = n * c, h * w
    xf = x.reshape(planes, hw)                          # lane-dense layout

    cblk = _pick_cblk(planes, hw, x.dtype.itemsize)
    n_steps = pl.cdiv(planes, cblk)
    planes_pad = n_steps * cblk
    if planes_pad != planes:
        # Ragged tail: zero-pad the planes axis (padded planes blur to zeros
        # and are sliced off below).
        xf = jnp.pad(xf, ((0, planes_pad - planes), (0, 0)))

    # TODO(synk): for very large frames (>= 512x512 f32) even an (8, hw) block
    # plus its f32 temporaries approaches v7x's 64 MiB VMEM; add a second grid
    # axis over rows with a +-1-row halo (manual DMA) for that regime.
    # Note: input_output_aliases={0: 0} would halve peak HBM allocation but is
    # only valid if callers never reuse the pre-blur tensor, so it is omitted.
    kernel = functools.partial(_blur_kernel, h=h, w=w, g0=_G0, g1=_G1)
    out = pl.pallas_call(
        kernel,
        out_shape=jax.ShapeDtypeStruct((planes_pad, hw), x.dtype),
        grid=(n_steps,),
        in_specs=[pl.BlockSpec((cblk, hw), lambda i: (i, 0))],
        out_specs=pl.BlockSpec((cblk, hw), lambda i: (i, 0)),
        compiler_params=pltpu.CompilerParams(
            dimension_semantics=("parallel",),
            vmem_limit_bytes=_VMEM_LIMIT_BYTES),
    )(xf)
    if planes_pad != planes:
        out = out[:planes]
    return out.reshape(n, c, h, w)


def random_apply(x, apply_fn):
    """RandomApply.forward with the host-side coin already drawn.

    Identity case returns x directly: no kernel launch, no HBM copy."""
    if not apply_fn:
        return x
    return gaussian_blur_3x3(x)


def _blur_ref(x):
    """Plain-JAX reference: 9-tap 3x3 zero-padded depthwise Gaussian blur."""
    n, c, h, w = x.shape
    xp = jnp.pad(x, ((0, 0), (0, 0), (1, 1), (1, 1)))
    out = jnp.zeros_like(x)
    for dy in (-1, 0, 1):
        for dx in (-1, 0, 1):
            out = out + float(_W2D[dy + 1, dx + 1]) * \
                xp[:, :, 1 + dy:1 + dy + h, 1 + dx:1 + dx + w]
    return out


if __name__ == "__main__":
    random.seed(0)
    key = jax.random.PRNGKey(0)
    x = jax.random.normal(key, (2, 4, 16, 16), dtype=jnp.float32)

    # RandomApply.forward: host-side coin, exactly `random.random() > self.p`
    coin = random.random()
    apply_fn = not (coin > P_APPLY)

    out = jax.block_until_ready(random_apply(x, apply_fn))

    # Exercise and verify both paths.
    out_skip = random_apply(x, False)
    assert out_skip is x                       # identity path: zero-cost, no kernel
    out_blur = jax.block_until_ready(random_apply(x, True))
    assert jnp.allclose(out_blur, _blur_ref(x), atol=1e-5)

    # Ragged / non-divisible planes axis (exercises the cdiv grid + padding).
    x_odd = jax.random.normal(jax.random.PRNGKey(1), (3, 3, 16, 16), jnp.float32)
    out_odd = jax.block_until_ready(gaussian_blur_3x3(x_odd))
    assert jnp.allclose(out_odd, _blur_ref(x_odd), atol=1e-5)

    expected = _blur_ref(x) if apply_fn else x
    assert jnp.allclose(out, expected, atol=1e-5)

    print("KERNEL_OK")
</pallas_src>

<mosaic_0001>
module attributes {stable_mosaic.version = 11 : i64} {
  func.func @_blur_kernel(%arg0: i32, %arg1: memref<8x256xf32, #tpu.memory_space<vmem>>, %arg2: memref<8x256xf32, #tpu.memory_space<vmem>>) attributes {dimension_semantics = [#tpu.dimension_semantics<parallel>], iteration_bounds = array<i64: 1>, scalar_prefetch = 0 : i64, scratch_operands = 0 : i64, tpu.core_type = #tpu.core_type<tc>, window_params = [{transform_indices = @transform_0, window_bounds = array<i64: 8, 256>}, {transform_indices = @transform_1, window_bounds = array<i64: 8, 256>}]} {
    %c0 = arith.constant 0 : index
    %c0_0 = arith.constant 0 : index
    %0 = vector.load %arg1[%c0, %c0_0] : memref<8x256xf32, #tpu.memory_space<vmem>>, vector<8x256xf32>
    %1 = tpu.iota {dimensions = array<i32: 1>} : vector<1x256xi32>
    %c16_i32 = arith.constant 16 : i32
    %2 = vector.broadcast %c16_i32 : i32 to vector<1x256xi32>
    %3 = arith.cmpi sge, %1, %2 : vector<1x256xi32>
    %c240_i32 = arith.constant 240 : i32
    %4 = vector.broadcast %c240_i32 : i32 to vector<1x256xi32>
    %5 = arith.cmpi slt, %1, %4 : vector<1x256xi32>
    %c16_i32_1 = arith.constant 16 : i32
    %c0_i32 = arith.constant 0 : i32
    %6 = arith.cmpi eq, %c16_i32_1, %c0_i32 : i32
    %c1_i32 = arith.constant 1 : i32
    %7 = arith.select %6, %c1_i32, %c16_i32_1 : i32
    %8 = vector.broadcast %7 : i32 to vector<1x256xi32>
    %9 = arith.remsi %1, %8 : vector<1x256xi32>
    %c0_i32_2 = arith.constant 0 : i32
    %10 = vector.broadcast %c0_i32_2 : i32 to vector<1x256xi32>
    %11 = arith.cmpi ne, %9, %10 : vector<1x256xi32>
    %c0_i32_3 = arith.constant 0 : i32
    %12 = vector.broadcast %c0_i32_3 : i32 to vector<1x256xi32>
    %13 = arith.cmpi slt, %9, %12 : vector<1x256xi32>
    %c0_i32_4 = arith.constant 0 : i32
    %14 = arith.cmpi slt, %7, %c0_i32_4 : i32
    %15 = vector.broadcast %14 : i1 to vector<1x256xi1>
    %16 = vector.broadcast %15 : vector<1x256xi1> to vector<1x256xi1>
    %17 = arith.xori %13, %16 : vector<1x256xi1>
    %18 = arith.andi %17, %11 : vector<1x256xi1>
    %19 = vector.broadcast %7 : i32 to vector<1x256xi32>
    %20 = arith.addi %9, %19 : vector<1x256xi32>
    %21 = arith.select %18, %20, %9 : vector<1x256xi1>, vector<1x256xi32>
    %c0_i32_5 = arith.constant 0 : i32
    %22 = vector.broadcast %c0_i32_5 : i32 to vector<1x256xi32>
    %23 = arith.cmpi ne, %21, %22 : vector<1x256xi32>
    %c15_i32 = arith.constant 15 : i32
    %24 = vector.broadcast %c15_i32 : i32 to vector<1x256xi32>
    %25 = arith.cmpi ne, %21, %24 : vector<1x256xi32>
    %c16_i32_6 = arith.constant 16 : i32
    %26 = tpu.dynamic_rotate %0 by %c16_i32_6 dim 1 : vector<8x256xf32>, i32 -> vector<8x256xf32>
    %c240_i32_7 = arith.constant 240 : i32
    %27 = tpu.dynamic_rotate %0 by %c240_i32_7 dim 1 : vector<8x256xf32>, i32 -> vector<8x256xf32>
    %cst = arith.constant 0.451862752 : f32
    %28 = vector.broadcast %cst : f32 to vector<8x256xf32>
    %29 = arith.mulf %28, %0 : vector<8x256xf32>
    %cst_8 = arith.constant 0.000000e+00 : f32
    %30 = vector.shape_cast %3 : vector<1x256xi1> to vector<1x256xi1>
    %31 = vector.broadcast %30 : vector<1x256xi1> to vector<8x256xi1>
    %32 = vector.broadcast %cst_8 : f32 to vector<8x256xf32>
    %33 = arith.select %31, %26, %32 : vector<8x256xi1>, vector<8x256xf32>
    %cst_9 = arith.constant 0.000000e+00 : f32
    %34 = vector.shape_cast %5 : vector<1x256xi1> to vector<1x256xi1>
    %35 = vector.broadcast %34 : vector<1x256xi1> to vector<8x256xi1>
    %36 = vector.broadcast %cst_9 : f32 to vector<8x256xf32>
    %37 = arith.select %35, %27, %36 : vector<8x256xi1>, vector<8x256xf32>
    %38 = arith.addf %33, %37 : vector<8x256xf32>
    %cst_10 = arith.constant 0.274068624 : f32
    %39 = vector.broadcast %cst_10 : f32 to vector<8x256xf32>
    %40 = arith.mulf %39, %38 : vector<8x256xf32>
    %41 = arith.addf %29, %40 : vector<8x256xf32>
    %c1_i32_11 = arith.constant 1 : i32
    %42 = tpu.dynamic_rotate %41 by %c1_i32_11 dim 1 : vector<8x256xf32>, i32 -> vector<8x256xf32>
    %c255_i32 = arith.constant 255 : i32
    %43 = tpu.dynamic_rotate %41 by %c255_i32 dim 1 : vector<8x256xf32>, i32 -> vector<8x256xf32>
    %cst_12 = arith.constant 0.451862752 : f32
    %44 = vector.broadcast %cst_12 : f32 to vector<8x256xf32>
    %45 = arith.mulf %44, %41 : vector<8x256xf32>
    %cst_13 = arith.constant 0.000000e+00 : f32
    %46 = vector.shape_cast %23 : vector<1x256xi1> to vector<1x256xi1>
    %47 = vector.broadcast %46 : vector<1x256xi1> to vector<8x256xi1>
    %48 = vector.broadcast %cst_13 : f32 to vector<8x256xf32>
    %49 = arith.select %47, %42, %48 : vector<8x256xi1>, vector<8x256xf32>
    %cst_14 = arith.constant 0.000000e+00 : f32
    %50 = vector.shape_cast %25 : vector<1x256xi1> to vector<1x256xi1>
    %51 = vector.broadcast %50 : vector<1x256xi1> to vector<8x256xi1>
    %52 = vector.broadcast %cst_14 : f32 to vector<8x256xf32>
    %53 = arith.select %51, %43, %52 : vector<8x256xi1>, vector<8x256xf32>
    %54 = arith.addf %49, %53 : vector<8x256xf32>
    %cst_15 = arith.constant 0.274068624 : f32
    %55 = vector.broadcast %cst_15 : f32 to vector<8x256xf32>
    %56 = arith.mulf %55, %54 : vector<8x256xf32>
    %57 = arith.addf %45, %56 : vector<8x256xf32>
    %c0_16 = arith.constant 0 : index
    %c0_17 = arith.constant 0 : index
    %58 = vector.load %arg2[%c0_16, %c0_17] : memref<8x256xf32, #tpu.memory_space<vmem>>, vector<8x256xf32>
    tpu.vector_store %arg2[%c0_16, %c0_17], %57 {strides = array<i32>} : memref<8x256xf32, #tpu.memory_space<vmem>>, vector<8x256xf32>,
    return
  }
  func.func @transform_0(%arg0: i32) -> (i32, i32) {
    %c0_i32 = arith.constant 0 : i32
    %c0_i32_0 = arith.constant 0 : i32
    return %arg0, %c0_i32 : i32, i32
  }
  func.func @transform_1(%arg0: i32) -> (i32, i32) {
    %c0_i32 = arith.constant 0 : i32
    %c0_i32_0 = arith.constant 0 : i32
    return %arg0, %c0_i32 : i32, i32
  }
}

</mosaic_0001>

<llo_original>
// kernel: tpu_custom_call.1
$region0: #{tpu_custom_call.1}
  #allocation0 [shape = 'u32[]', space=smem, size = 0x4, offset = 0x4, fixed_abs, tag = 'smem constant byte address 0x4 - core index']
  #allocation1 [shape = 'u32[144,128]{1,0:T(1,128)}', space=vmem, size = 0x12000, scoped, tag = 'internal scratch']
  %s0 = inlined_call_operand.hbm [shape: f32[8,256], index: 0, kind: input, shape index: {}]
  %s1 = inlined_call_operand.hbm [shape: f32[8,256], index: 1, kind: output, shape index: {}]
  %s2 = sld [smem:[#allocation0]]
  $region18: #{tpu_custom_call.1} parent=0
    _
  %s4 = ssub.s32 1, %s2
  %s5 = scalar_select 0, %s4, %s2
  $region1: #{tpu_custom_call.1} parent=0
    #allocation2 [shape = 'u8[8192]{0}', space=vmem, size = 0x2000, scoped, tag = 'input window, operand 0, single buffered']
    #allocation3 [shape = 's32[1]{0}', space=sflag, size = 0x4, scoped, tag = 'scoped memory for tpu_custom_call.1']
    #allocation4 [shape = 's32[1]{0}', space=sflag, size = 0x4, scoped, tag = 'scoped memory for tpu_custom_call.1']
    #allocation5 [shape = 'u8[8192]{0}', space=vmem, size = 0x2000, scoped, tag = 'output window, operand 0, single buffered']
    %6 = vsyncpa [#allocation3], 0
    %7 = vsyncpa [#allocation4], 0
    // Predicated region
    $region2: #{tpu_custom_call.1} parent=1 // pred_check
      _
    $region3: #{tpu_custom_call.1} parent=1 // pred_check_branch
      %9 = sbr.rel (0) target = $region5
    $region4: #{tpu_custom_call.1} parent=1 // pred_region
      %s11 = ssub.s32 256, 256
      %12 = vsyncadd [#allocation3], %s11
      %s14 = sshll.u32 [#allocation2], 4
      %s15 = int_to_ptr.vmem [resolvable:$true] %s14
      %17 = dma.hbm_to_vmem [thread:$0]  %s0, 256, %s15, [#allocation3]
    $region5: #{tpu_custom_call.1} parent=1 // pred_fallthru
      _
    // Predicated region
    $region6: #{tpu_custom_call.1} parent=1 // pred_check
      _
    $region7: #{tpu_custom_call.1} parent=1 // pred_check_branch
      %19 = sbr.rel (0) target = $region9
    $region8: #{tpu_custom_call.1} parent=1 // pred_region
      %20 = dma.done [#allocation3], 256
    $region9: #{tpu_custom_call.1} parent=1 // pred_fallthru
      _
    %v21 = vld [vmem:[#allocation2] sm:$0xff]
    %v22 = vld [vmem:[#allocation2 + $0x8] sm:$0xff]
    %v23 = vlaneseq
    %v24 = vand.u32 %v23, 127
    %v25 = vadd.s32 %v24, 128
    %vm26 = vcmp.ge.s32.totalorder %v24, 16
    %vm27 = vcmp.ge.s32.totalorder %v25, 16
    %vm28 = vcmp.lt.s32.totalorder %v24, 240
    %vm29 = vcmp.lt.s32.totalorder %v25, 240
    %vm30 = vcmp.lt.s32.totalorder %v24, 0
    %v31 = vsub.s32 0, %v24
    %v32 = vsel %vm30, %v31, %v24
    %v33 = vshrl.u32 %v32, 4
    %v34 = vand.u32 %v32, 15
    %v35 = vsub.s32 0, %v34
    %v36 = vsel %vm30, %v35, %v34
    %vm37 = vcmp.lt.s32.totalorder %v25, 0
    %v38 = vsub.s32 0, %v25
    %v39 = vsel %vm37, %v38, %v25
    %v40 = vshrl.u32 %v39, 4
    %v41 = vand.u32 %v39, 15
    %v42 = vsub.s32 0, %v41
    %v43 = vsel %vm37, %v42, %v41
    %vm44 = vcmp.ne.s32.totalorder %v36, 0
    %vm45 = vcmp.ne.s32.totalorder %v43, 0
    %vm46 = vcmp.lt.s32.totalorder %v36, 0
    %vm47 = vcmp.lt.s32.totalorder %v43, 0
    %vm48 = vmand %vm46, %vm44
    %vm49 = vmand %vm47, %vm45
    %v50 = vadd.s32 %v36, 16
    %v51 = vadd.s32 %v43, 16
    %v52 = vsel %vm48, %v50, %v36
    %v53 = vsel %vm49, %v51, %v43
    %vm54 = vcmp.ne.s32.totalorder %v52, 0
    %vm55 = vcmp.ne.s32.totalorder %v53, 0
    %vm56 = vcmp.ne.s32.totalorder %v52, 15
    %vm57 = vcmp.ne.s32.totalorder %v53, 15
    %58 = vrot.lane.b32.xlu0 %v21, 16
    %v59 = vpop.permute.xlu0 %58
    %60 = vrot.lane.b32.xlu0 %v22, 16
    %v61 = vpop.permute.xlu0 %60
    %vm62 = vcmp.lt.s32.totalorder %v24, 16
    %v63 = vsel %vm62, %v59, %v61
    %v64 = vsel %vm62, %v61, %v59
    %65 = vrot.lane.b32.xlu0 %v21, 112
    %v66 = vpop.permute.xlu0 %65
    %67 = vrot.lane.b32.xlu0 %v22, 112
    %v68 = vpop.permute.xlu0 %67
    %vm69 = vcmp.lt.s32.totalorder %v24, 112
    %v70 = vsel %vm69, %v66, %v68
    %v71 = vsel %vm69, %v68, %v66
    %v72 = vmul.f32 %v21, 0.45186275
    %v73 = vmul.f32 %v22, 0.45186275
    %v74 = vsel %vm26, 1, 0
    %v75 = vsel %vm27, 1, 0
    %vm76 = vcmp.eq.s32.totalorder %v74, 1
    %vm77 = vcmp.eq.s32.totalorder %v75, 1
    %v78 = vsel %vm76, %v64, 0.0
    %v79 = vsel %vm77, %v63, 0.0
    %v80 = vsel %vm28, 1, 0
    %v81 = vsel %vm29, 1, 0
    %vm82 = vcmp.eq.s32.totalorder %v80, 1
    %vm83 = vcmp.eq.s32.totalorder %v81, 1
    %v84 = vsel %vm82, %v70, 0.0
    %v85 = vsel %vm83, %v71, 0.0
    %v86 = vadd.f32 %v78, %v84
    %v87 = vadd.f32 %v79, %v85
    %v88 = vmul.f32 %v86, 0.27406862
    %v89 = vmul.f32 %v87, 0.27406862
    %v90 = vadd.f32 %v72, %v88
    %v91 = vadd.f32 %v73, %v89
    %92 = vrot.lane.b32.xlu0 %v90, 1
    %v93 = vpop.permute.xlu0 %92
    %94 = vrot.lane.b32.xlu0 %v91, 1
    %v95 = vpop.permute.xlu0 %94
    %vm96 = vcmp.lt.s32.totalorder %v24, 1
    %v97 = vsel %vm96, %v93, %v95
    %v98 = vsel %vm96, %v95, %v93
    %99 = vrot.lane.b32.xlu0 %v90, 127
    %v100 = vpop.permute.xlu0 %99
    %101 = vrot.lane.b32.xlu0 %v91, 127
    %v102 = vpop.permute.xlu0 %101
    %vm103 = vcmp.lt.s32.totalorder %v24, 127
    %v104 = vsel %vm103, %v100, %v102
    %v105 = vsel %vm103, %v102, %v100
    %v106 = vmul.f32 %v90, 0.45186275
    %v107 = vmul.f32 %v91, 0.45186275
    %v108 = vsel %vm54, 1, 0
    %v109 = vsel %vm55, 1, 0
    %vm110 = vcmp.eq.s32.totalorder %v108, 1
    %vm111 = vcmp.eq.s32.totalorder %v109, 1
    %v112 = vsel %vm110, %v98, 0.0
    %v113 = vsel %vm111, %v97, 0.0
    %v114 = vsel %vm56, 1, 0
    %v115 = vsel %vm57, 1, 0
    %vm116 = vcmp.eq.s32.totalorder %v114, 1
    %vm117 = vcmp.eq.s32.totalorder %v115, 1
    %v118 = vsel %vm116, %v104, 0.0
    %v119 = vsel %vm117, %v105, 0.0
    %v120 = vadd.f32 %v112, %v118
    %v121 = vadd.f32 %v113, %v119
    %v122 = vmul.f32 %v120, 0.27406862
    %v123 = vmul.f32 %v121, 0.27406862
    %v124 = vadd.f32 %v106, %v122
    %v125 = vadd.f32 %v107, %v123
    %126 = vst [vmem:[#allocation5] sm:$0xff] %v124
    %127 = vst [vmem:[#allocation5 + $0x8] sm:$0xff] %v125
    // Predicated region
    $region10: #{tpu_custom_call.1} parent=1 // pred_check
      _
    $region11: #{tpu_custom_call.1} parent=1 // pred_check_branch
      %129 = sbr.rel (0) target = $region13
    $region12: #{tpu_custom_call.1} parent=1 // pred_region
      %s131 = ssub.s32 256, 256
      %132 = vsyncadd [#allocation4], %s131
      %s134 = sshll.u32 [#allocation5], 4
      %s135 = int_to_ptr.vmem [resolvable:$true] %s134
      %137 = dma.vmem_to_hbm [thread:$0]  %s135, 256, %s1, [#allocation4]
    $region13: #{tpu_custom_call.1} parent=1 // pred_fallthru
      _
    // Predicated region
    $region14: #{tpu_custom_call.1} parent=1 // pred_check
      _
    $region15: #{tpu_custom_call.1} parent=1 // pred_check_branch
      %139 = sbr.rel (0) target = $region17
    $region16: #{tpu_custom_call.1} parent=1 // pred_region
      %140 = dma.done [#allocation4], 256
    $region17: #{tpu_custom_call.1} parent=1 // pred_fallthru
      _
    %141 = vsyncpa [#allocation3], 1
    %142 = vsyncpa [#allocation4], 1

</llo_original>
